<compile_context>
chip_gen: v7x
topology: tpu7x:2x2x1
jax: 0.10.0
libtpu: 0.0.40
codegen_flags: <defaults>
</compile_context>

<pallas_src>
import jax
import jax.numpy as jnp
import numpy as np
from jax.experimental import pallas as pl
from jax.experimental.pallas import tpu as pltpu

DENSE_DIM = 11
ID_DIM = 182
TOTAL_DIM = DENSE_DIM + ID_DIM          # 193
ID_HIDDEN = 32
ID_OUT = 8
COMMON_HIDDEN = 32
OUT_DIM = 50


def _round_up(x, m):
    return (x + m - 1) // m * m


def fusion_kernel(obs_ref,
                  w1id_ref, b1id_ref, w2id_ref, b2id_ref,
                  w1c_x_ref, w1c_e_ref, b1c_ref, w2c_ref, b2c_ref,
                  out_ref):
    x = obs_ref[...]                                             # [tb, 193]

    # ---- id_onehot MLP: Linear -> ReLU -> Linear -> tanh ----
    # w1id_ref is zero-padded on the dense rows, so x @ w1id == id_x @ W1id.
    h_id = jnp.dot(x, w1id_ref[...],
                   preferred_element_type=jnp.float32) + b1id_ref[...]
    h_id = jnp.maximum(h_id, 0.0)                                # relu
    emb = jnp.tanh(jnp.dot(h_id, w2id_ref[...],
                           preferred_element_type=jnp.float32) + b2id_ref[...])

    # ---- common MLP on concat(dense_x, emb): Linear -> ReLU -> Linear ----
    # concat is folded: relu(concat(d, e) @ W1c + b)
    #                 == relu(x @ W1c_x_padded + e @ W1c_e + b)
    h_c = (jnp.dot(x, w1c_x_ref[...], preferred_element_type=jnp.float32)
           + jnp.dot(emb, w1c_e_ref[...], preferred_element_type=jnp.float32)
           + b1c_ref[...])
    h_c = jnp.maximum(h_c, 0.0)                                  # relu
    y = jnp.dot(h_c, w2c_ref[...], preferred_element_type=jnp.float32) + b2c_ref[...]
    out_ref[...] = y.astype(out_ref.dtype)                       # out_act = identity


def fusion_embedding_net(obs, packed_params, *, batch_tile=1024):
    """obs: [B, 193] f32. Returns [B, 50] f32.

    batch_tile is the main perf knob (512-2048 recommended on real workloads;
    it is clamped to the padded batch for small inputs)."""
    B, F = obs.shape
    assert F == TOTAL_DIM, f"expected obs[..., {TOTAL_DIM}], got {F}"

    # Tile selection: multiple of 8 sublanes, no larger than the padded batch.
    tb = max(8, min(_round_up(batch_tile, 8), _round_up(B, 8)))
    B_pad = _round_up(B, tb)
    if B_pad != B:
        # Ragged path only: pads to a tile multiple (waste < tb rows).
        obs = jnp.pad(obs, ((0, B_pad - B), (0, 0)))

    (w1id, b1id, w2id, b2id, w1c_x, w1c_e, b1c, w2c, b2c) = packed_params

    grid = (B_pad // tb,)

    def batch_map(i):
        return (i, 0)

    def replicated_map(i):
        return (0, 0)

    in_specs = [
        pl.BlockSpec((tb, TOTAL_DIM), batch_map),                    # obs
        pl.BlockSpec((TOTAL_DIM, ID_HIDDEN), replicated_map),        # w1id (padded)
        pl.BlockSpec((1, ID_HIDDEN), replicated_map),                # b1id
        pl.BlockSpec((ID_HIDDEN, ID_OUT), replicated_map),           # w2id
        pl.BlockSpec((1, ID_OUT), replicated_map),                   # b2id
        pl.BlockSpec((TOTAL_DIM, COMMON_HIDDEN), replicated_map),    # w1c_x (padded)
        pl.BlockSpec((ID_OUT, COMMON_HIDDEN), replicated_map),       # w1c_e
        pl.BlockSpec((1, COMMON_HIDDEN), replicated_map),            # b1c
        pl.BlockSpec((COMMON_HIDDEN, OUT_DIM), replicated_map),      # w2c
        pl.BlockSpec((1, OUT_DIM), replicated_map),                  # b2c
    ]
    out_spec = pl.BlockSpec((tb, OUT_DIM), batch_map)

    out = pl.pallas_call(
        fusion_kernel,
        out_shape=jax.ShapeDtypeStruct((B_pad, OUT_DIM), jnp.float32),
        grid_spec=pltpu.PrefetchScalarGridSpec(
            num_scalar_prefetch=0,
            grid=grid,
            in_specs=in_specs,
            out_specs=out_spec,
        ),
        compiler_params=pltpu.CompilerParams(
            dimension_semantics=("parallel",)),
    )(obs, w1id, b1id, w2id, b2id, w1c_x, w1c_e, b1c, w2c, b2c)

    # Only slice when the batch was actually padded (avoids a no-op copy).
    return out if B_pad == B else out[:B]


# ----------------------------- parameter handling -----------------------------

def init_params(key):
    """Deterministic 'raw' parameters (PyTorch-Linear-like uniform fan-in init),
    stored pre-transposed as [in, out]."""
    def linear(key, fan_in, fan_out):
        kw, kb = jax.random.split(key)
        bound = 1.0 / np.sqrt(fan_in)
        w = jax.random.uniform(kw, (fan_in, fan_out), jnp.float32, -bound, bound)
        b = jax.random.uniform(kb, (fan_out,), jnp.float32, -bound, bound)
        return w, b

    k1, k2, k3, k4 = jax.random.split(key, 4)
    w1id, b1id = linear(k1, ID_DIM, ID_HIDDEN)
    w2id, b2id = linear(k2, ID_HIDDEN, ID_OUT)
    w1c, b1c = linear(k3, DENSE_DIM + ID_OUT, COMMON_HIDDEN)
    w2c, b2c = linear(k4, COMMON_HIDDEN, OUT_DIM)
    return dict(w1id=w1id, b1id=b1id, w2id=w2id, b2id=b2id,
                w1c=w1c, b1c=b1c, w2c=w2c, b2c=b2c)


def pack_params(raw):
    """Rearrange / zero-pad raw params into the kernel layout:
      * w1id -> [193, 32]: dense rows (0..10) zero, id rows = raw w1id
      * w1c  -> split: obs part [193, 32] (id rows zero) + embedding part [8, 32]
      * biases reshaped to (1, N) for in-kernel broadcast
    """
    w1id_full = jnp.zeros((TOTAL_DIM, ID_HIDDEN), jnp.float32)
    w1id_full = w1id_full.at[DENSE_DIM:, :].set(raw["w1id"])

    w1c_x = jnp.zeros((TOTAL_DIM, COMMON_HIDDEN), jnp.float32)
    w1c_x = w1c_x.at[:DENSE_DIM, :].set(raw["w1c"][:DENSE_DIM, :])
    w1c_e = raw["w1c"][DENSE_DIM:, :]

    return (w1id_full,
            raw["b1id"][None, :],
            raw["w2id"],
            raw["b2id"][None, :],
            w1c_x,
            w1c_e,
            raw["b1c"][None, :],
            raw["w2c"],
            raw["b2c"][None, :])


def reference_forward(obs, raw):
    """Pure-JAX reference matching the PyTorch module semantics."""
    dense_x = obs[:, :DENSE_DIM]
    id_x = obs[:, DENSE_DIM:]
    h = jnp.maximum(id_x @ raw["w1id"] + raw["b1id"], 0.0)
    emb = jnp.tanh(h @ raw["w2id"] + raw["b2id"])
    merge = jnp.concatenate([dense_x, emb], axis=-1)
    h2 = jnp.maximum(merge @ raw["w1c"] + raw["b1c"], 0.0)
    return h2 @ raw["w2c"] + raw["b2c"]


if __name__ == "__main__":
    key = jax.random.PRNGKey(0)
    k_obs, k_obs2, k_params = jax.random.split(key, 3)

    raw_params = init_params(k_params)
    packed = pack_params(raw_params)

    # Small, tile-aligned batch.
    B = 16
    obs = jax.random.normal(k_obs, (B, TOTAL_DIM), jnp.float32)
    y = jax.block_until_ready(fusion_embedding_net(obs, packed, batch_tile=1024))
    assert y.shape == (B, OUT_DIM)
    y_ref = reference_forward(obs, raw_params)
    np.testing.assert_allclose(np.asarray(y), np.asarray(y_ref), rtol=1e-5, atol=1e-5)

    # Ragged batch (exercises the padding path so large tiles work for any B).
    B2 = 13
    obs2 = jax.random.normal(k_obs2, (B2, TOTAL_DIM), jnp.float32)
    y2 = jax.block_until_ready(fusion_embedding_net(obs2, packed, batch_tile=1024))
    assert y2.shape == (B2, OUT_DIM)
    y2_ref = reference_forward(obs2, raw_params)
    np.testing.assert_allclose(np.asarray(y2), np.asarray(y2_ref), rtol=1e-5, atol=1e-5)

    print("KERNEL_OK")
</pallas_src>

<mosaic_0001>
module attributes {stable_mosaic.version = 11 : i64} {
  func.func @fusion_kernel(%arg0: i32, %arg1: memref<16x193xf32, #tpu.memory_space<vmem>>, %arg2: memref<193x32xf32, #tpu.memory_space<vmem>>, %arg3: memref<1x32xf32, #tpu.memory_space<vmem>>, %arg4: memref<32x8xf32, #tpu.memory_space<vmem>>, %arg5: memref<1x8xf32, #tpu.memory_space<vmem>>, %arg6: memref<193x32xf32, #tpu.memory_space<vmem>>, %arg7: memref<8x32xf32, #tpu.memory_space<vmem>>, %arg8: memref<1x32xf32, #tpu.memory_space<vmem>>, %arg9: memref<32x50xf32, #tpu.memory_space<vmem>>, %arg10: memref<1x50xf32, #tpu.memory_space<vmem>>, %arg11: memref<16x50xf32, #tpu.memory_space<vmem>>) attributes {dimension_semantics = [#tpu.dimension_semantics<parallel>], iteration_bounds = array<i64: 1>, scalar_prefetch = 0 : i64, scratch_operands = 0 : i64, tpu.core_type = #tpu.core_type<tc>, window_params = [{transform_indices = @transform_0, window_bounds = array<i64: 16, 193>}, {pipeline_mode = #tpu.pipeline_mode<synchronous>, transform_indices = @transform_1, window_bounds = array<i64: 193, 32>}, {pipeline_mode = #tpu.pipeline_mode<synchronous>, transform_indices = @transform_2, window_bounds = array<i64: 1, 32>}, {pipeline_mode = #tpu.pipeline_mode<synchronous>, transform_indices = @transform_3, window_bounds = array<i64: 32, 8>}, {pipeline_mode = #tpu.pipeline_mode<synchronous>, transform_indices = @transform_4, window_bounds = array<i64: 1, 8>}, {pipeline_mode = #tpu.pipeline_mode<synchronous>, transform_indices = @transform_5, window_bounds = array<i64: 193, 32>}, {pipeline_mode = #tpu.pipeline_mode<synchronous>, transform_indices = @transform_6, window_bounds = array<i64: 8, 32>}, {pipeline_mode = #tpu.pipeline_mode<synchronous>, transform_indices = @transform_7, window_bounds = array<i64: 1, 32>}, {pipeline_mode = #tpu.pipeline_mode<synchronous>, transform_indices = @transform_8, window_bounds = array<i64: 32, 50>}, {pipeline_mode = #tpu.pipeline_mode<synchronous>, transform_indices = @transform_9, window_bounds = array<i64: 1, 50>}, {transform_indices = @transform_10, window_bounds = array<i64: 16, 50>}]} {
    %c0 = arith.constant 0 : index
    %c0_0 = arith.constant 0 : index
    %0 = vector.load %arg1[%c0, %c0_0] : memref<16x193xf32, #tpu.memory_space<vmem>>, vector<16x193xf32>
    %c0_1 = arith.constant 0 : index
    %c0_2 = arith.constant 0 : index
    %1 = vector.load %arg2[%c0_1, %c0_2] : memref<193x32xf32, #tpu.memory_space<vmem>>, vector<193x32xf32>
    %cst = arith.constant dense<0.000000e+00> : vector<16x32xf32>
    %2 = tpu.matmul %0, %1, %cst {dimension_numbers = #tpu.dot_dimension_numbers<[1], [0], [0], [1], [0, 0, 1, 1], [], []>} : vector<16x193xf32>, vector<193x32xf32>, vector<16x32xf32> -> vector<16x32xf32>
    %c0_3 = arith.constant 0 : index
    %c0_4 = arith.constant 0 : index
    %3 = vector.load %arg3[%c0_3, %c0_4] : memref<1x32xf32, #tpu.memory_space<vmem>>, vector<1x32xf32>
    %4 = vector.broadcast %3 : vector<1x32xf32> to vector<16x32xf32>
    %5 = arith.addf %2, %4 : vector<16x32xf32>
    %cst_5 = arith.constant 0.000000e+00 : f32
    %6 = vector.broadcast %cst_5 : f32 to vector<16x32xf32>
    %7 = arith.maximumf %5, %6 : vector<16x32xf32>
    %c0_6 = arith.constant 0 : index
    %c0_7 = arith.constant 0 : index
    %8 = vector.load %arg4[%c0_6, %c0_7] : memref<32x8xf32, #tpu.memory_space<vmem>>, vector<32x8xf32>
    %cst_8 = arith.constant dense<0.000000e+00> : vector<16x8xf32>
    %9 = tpu.matmul %7, %8, %cst_8 {dimension_numbers = #tpu.dot_dimension_numbers<[1], [0], [0], [1], [0, 0, 1, 1], [], []>} : vector<16x32xf32>, vector<32x8xf32>, vector<16x8xf32> -> vector<16x8xf32>
    %c0_9 = arith.constant 0 : index
    %c0_10 = arith.constant 0 : index
    %10 = vector.load %arg5[%c0_9, %c0_10] : memref<1x8xf32, #tpu.memory_space<vmem>>, vector<1x8xf32>
    %11 = vector.broadcast %10 : vector<1x8xf32> to vector<16x8xf32>
    %12 = arith.addf %9, %11 : vector<16x8xf32>
    %13 = math.tanh %12 : vector<16x8xf32>
    %c0_11 = arith.constant 0 : index
    %c0_12 = arith.constant 0 : index
    %14 = vector.load %arg6[%c0_11, %c0_12] : memref<193x32xf32, #tpu.memory_space<vmem>>, vector<193x32xf32>
    %cst_13 = arith.constant dense<0.000000e+00> : vector<16x32xf32>
    %15 = tpu.matmul %0, %14, %cst_13 {dimension_numbers = #tpu.dot_dimension_numbers<[1], [0], [0], [1], [0, 0, 1, 1], [], []>} : vector<16x193xf32>, vector<193x32xf32>, vector<16x32xf32> -> vector<16x32xf32>
    %c0_14 = arith.constant 0 : index
    %c0_15 = arith.constant 0 : index
    %16 = vector.load %arg7[%c0_14, %c0_15] : memref<8x32xf32, #tpu.memory_space<vmem>>, vector<8x32xf32>
    %cst_16 = arith.constant dense<0.000000e+00> : vector<16x32xf32>
    %17 = tpu.matmul %13, %16, %cst_16 {dimension_numbers = #tpu.dot_dimension_numbers<[1], [0], [0], [1], [0, 0, 1, 1], [], []>} : vector<16x8xf32>, vector<8x32xf32>, vector<16x32xf32> -> vector<16x32xf32>
    %18 = arith.addf %15, %17 : vector<16x32xf32>
    %c0_17 = arith.constant 0 : index
    %c0_18 = arith.constant 0 : index
    %19 = vector.load %arg8[%c0_17, %c0_18] : memref<1x32xf32, #tpu.memory_space<vmem>>, vector<1x32xf32>
    %20 = vector.broadcast %19 : vector<1x32xf32> to vector<16x32xf32>
    %21 = arith.addf %18, %20 : vector<16x32xf32>
    %cst_19 = arith.constant 0.000000e+00 : f32
    %22 = vector.broadcast %cst_19 : f32 to vector<16x32xf32>
    %23 = arith.maximumf %21, %22 : vector<16x32xf32>
    %c0_20 = arith.constant 0 : index
    %c0_21 = arith.constant 0 : index
    %24 = vector.load %arg9[%c0_20, %c0_21] : memref<32x50xf32, #tpu.memory_space<vmem>>, vector<32x50xf32>
    %cst_22 = arith.constant dense<0.000000e+00> : vector<16x50xf32>
    %25 = tpu.matmul %23, %24, %cst_22 {dimension_numbers = #tpu.dot_dimension_numbers<[1], [0], [0], [1], [0, 0, 1, 1], [], []>} : vector<16x32xf32>, vector<32x50xf32>, vector<16x50xf32> -> vector<16x50xf32>
    %c0_23 = arith.constant 0 : index
    %c0_24 = arith.constant 0 : index
    %26 = vector.load %arg10[%c0_23, %c0_24] : memref<1x50xf32, #tpu.memory_space<vmem>>, vector<1x50xf32>
    %27 = vector.broadcast %26 : vector<1x50xf32> to vector<16x50xf32>
    %28 = arith.addf %25, %27 : vector<16x50xf32>
    %c0_25 = arith.constant 0 : index
    %c0_26 = arith.constant 0 : index
    %29 = vector.load %arg11[%c0_25, %c0_26] : memref<16x50xf32, #tpu.memory_space<vmem>>, vector<16x50xf32>
    tpu.vector_store %arg11[%c0_25, %c0_26], %28 {strides = array<i32>} : memref<16x50xf32, #tpu.memory_space<vmem>>, vector<16x50xf32>,
    return
  }
  func.func @transform_0(%arg0: i32) -> (i32, i32) {
    %c0_i32 = arith.constant 0 : i32
    %c0_i32_0 = arith.constant 0 : i32
    return %arg0, %c0_i32 : i32, i32
  }
  func.func @transform_1(%arg0: i32) -> (i32, i32) {
    %c0_i32 = arith.constant 0 : i32
    %c0_i32_0 = arith.constant 0 : i32
    %c0_i32_1 = arith.constant 0 : i32
    return %c0_i32, %c0_i32_0 : i32, i32
  }
  func.func @transform_2(%arg0: i32) -> (i32, i32) {
    %c0_i32 = arith.constant 0 : i32
    %c0_i32_0 = arith.constant 0 : i32
    %c0_i32_1 = arith.constant 0 : i32
    return %c0_i32, %c0_i32_0 : i32, i32
  }
  func.func @transform_3(%arg0: i32) -> (i32, i32) {
    %c0_i32 = arith.constant 0 : i32
    %c0_i32_0 = arith.constant 0 : i32
    %c0_i32_1 = arith.constant 0 : i32
    return %c0_i32, %c0_i32_0 : i32, i32
  }
  func.func @transform_4(%arg0: i32) -> (i32, i32) {
    %c0_i32 = arith.constant 0 : i32
    %c0_i32_0 = arith.constant 0 : i32
    %c0_i32_1 = arith.constant 0 : i32
    return %c0_i32, %c0_i32_0 : i32, i32
  }
  func.func @transform_5(%arg0: i32) -> (i32, i32) {
    %c0_i32 = arith.constant 0 : i32
    %c0_i32_0 = arith.constant 0 : i32
    %c0_i32_1 = arith.constant 0 : i32
    return %c0_i32, %c0_i32_0 : i32, i32
  }
  func.func @transform_6(%arg0: i32) -> (i32, i32) {
    %c0_i32 = arith.constant 0 : i32
    %c0_i32_0 = arith.constant 0 : i32
    %c0_i32_1 = arith.constant 0 : i32
    return %c0_i32, %c0_i32_0 : i32, i32
  }
  func.func @transform_7(%arg0: i32) -> (i32, i32) {
    %c0_i32 = arith.constant 0 : i32
    %c0_i32_0 = arith.constant 0 : i32
    %c0_i32_1 = arith.constant 0 : i32
    return %c0_i32, %c0_i32_0 : i32, i32
  }
  func.func @transform_8(%arg0: i32) -> (i32, i32) {
    %c0_i32 = arith.constant 0 : i32
    %c0_i32_0 = arith.constant 0 : i32
    %c0_i32_1 = arith.constant 0 : i32
    return %c0_i32, %c0_i32_0 : i32, i32
  }
  func.func @transform_9(%arg0: i32) -> (i32, i32) {
    %c0_i32 = arith.constant 0 : i32
    %c0_i32_0 = arith.constant 0 : i32
    %c0_i32_1 = arith.constant 0 : i32
    return %c0_i32, %c0_i32_0 : i32, i32
  }
  func.func @transform_10(%arg0: i32) -> (i32, i32) {
    %c0_i32 = arith.constant 0 : i32
    %c0_i32_0 = arith.constant 0 : i32
    return %arg0, %c0_i32 : i32, i32
  }
}

</mosaic_0001>

<llo_original>
// kernel: tpu_custom_call.1
$region0: #{tpu_custom_call.1}
  #allocation0 [shape = 'u32[]', space=smem, size = 0x4, offset = 0x4, fixed_abs, tag = 'smem constant byte address 0x4 - core index']
  #allocation1 [shape = 'u32[144,128]{1,0:T(1,128)}', space=vmem, size = 0x12000, scoped, tag = 'internal scratch']
  %s0 = inlined_call_operand.vmem [shape: f32[16,193], index: 0, kind: input, shape index: {}]
  %s1 = inlined_call_operand.vmem [shape: f32[193,32], index: 1, kind: input, shape index: {}]
  %s2 = inlined_call_operand.vmem [shape: f32[1,32], index: 2, kind: input, shape index: {}]
  %s3 = inlined_call_operand.vmem [shape: f32[32,8], index: 3, kind: input, shape index: {}]
  %s4 = inlined_call_operand.vmem [shape: f32[1,8], index: 4, kind: input, shape index: {}]
  %s5 = inlined_call_operand.vmem [shape: f32[193,32], index: 5, kind: input, shape index: {}]
  %s6 = inlined_call_operand.vmem [shape: f32[8,32], index: 6, kind: input, shape index: {}]
  %s7 = inlined_call_operand.vmem [shape: f32[1,32], index: 7, kind: input, shape index: {}]
  %s8 = inlined_call_operand.vmem [shape: f32[32,50], index: 8, kind: input, shape index: {}]
  %s9 = inlined_call_operand.vmem [shape: f32[1,50], index: 9, kind: input, shape index: {}]
  %s10 = inlined_call_operand.hbm [shape: f32[16,50], index: 10, kind: output, shape index: {}]
  %s11 = sld [smem:[#allocation0]]
  $region50: #{tpu_custom_call.1} parent=0
    _
  %s13 = ssub.s32 1, %s11
  %s14 = scalar_select 0, %s13, %s11
  $region1: #{tpu_custom_call.1} parent=0
    #allocation2 [shape = 'u8[8192]{0}', space=vmem, size = 0x2000, scoped, tag = 'output window, operand 0, single buffered']
    #allocation3 [shape = 's32[1]{0}', space=sflag, size = 0x4, scoped, tag = 'scoped memory for tpu_custom_call.1']
    %15 = vsyncpa [#allocation3], 0
    // Predicated region
    $region2: #{tpu_custom_call.1} parent=1 // pred_check
      _
    $region3: #{tpu_custom_call.1} parent=1 // pred_check_branch
      %17 = sbr.rel (0) target = $region5
    $region4: #{tpu_custom_call.1} parent=1 // pred_region
      _
    $region5: #{tpu_custom_call.1} parent=1 // pred_fallthru
      _
    // Predicated region
    $region6: #{tpu_custom_call.1} parent=1 // pred_check
      _
    $region7: #{tpu_custom_call.1} parent=1 // pred_check_branch
      %19 = sbr.rel (0) target = $region9
    $region8: #{tpu_custom_call.1} parent=1 // pred_region
      _
    $region9: #{tpu_custom_call.1} parent=1 // pred_fallthru
      _
    // Predicated region
    $region10: #{tpu_custom_call.1} parent=1 // pred_check
      _
    $region11: #{tpu_custom_call.1} parent=1 // pred_check_branch
      %21 = sbr.rel (0) target = $region13
    $region12: #{tpu_custom_call.1} parent=1 // pred_region
      _
    $region13: #{tpu_custom_call.1} parent=1 // pred_fallthru
      _
    // Predicated region
    $region14: #{tpu_custom_call.1} parent=1 // pred_check
      _
    $region15: #{tpu_custom_call.1} parent=1 // pred_check_branch
      %23 = sbr.rel (0) target = $region17
    $region16: #{tpu_custom_call.1} parent=1 // pred_region
      _
    $region17: #{tpu_custom_call.1} parent=1 // pred_fallthru
      _
    // Predicated region
    $region18: #{tpu_custom_call.1} parent=1 // pred_check
      _
    $region19: #{tpu_custom_call.1} parent=1 // pred_check_branch
      %25 = sbr.rel (0) target = $region21
    $region20: #{tpu_custom_call.1} parent=1 // pred_region
      _
    $region21: #{tpu_custom_call.1} parent=1 // pred_fallthru
      _
    // Predicated region
    $region22: #{tpu_custom_call.1} parent=1 // pred_check
      _
    $region23: #{tpu_custom_call.1} parent=1 // pred_check_branch
      %27 = sbr.rel (0) target = $region25
    $region24: #{tpu_custom_call.1} parent=1 // pred_region
      _
    $region25: #{tpu_custom_call.1} parent=1 // pred_fallthru
      _
    // Predicated region
    $region26: #{tpu_custom_call.1} parent=1 // pred_check
      _
    $region27: #{tpu_custom_call.1} parent=1 // pred_check_branch
      %29 = sbr.rel (0) target = $region29
    $region28: #{tpu_custom_call.1} parent=1 // pred_region
      _
    $region29: #{tpu_custom_call.1} parent=1 // pred_fallthru
      _
    // Predicated region
    $region30: #{tpu_custom_call.1} parent=1 // pred_check
      _
    $region31: #{tpu_custom_call.1} parent=1 // pred_check_branch
      %31 = sbr.rel (0) target = $region33
    $region32: #{tpu_custom_call.1} parent=1 // pred_region
      _
    $region33: #{tpu_custom_call.1} parent=1 // pred_fallthru
      _
    // Predicated region
    $region34: #{tpu_custom_call.1} parent=1 // pred_check
      _
    $region35: #{tpu_custom_call.1} parent=1 // pred_check_branch
      %33 = sbr.rel (0) target = $region37
    $region36: #{tpu_custom_call.1} parent=1 // pred_region
      _
    $region37: #{tpu_custom_call.1} parent=1 // pred_fallthru
      _
    // Predicated region
    $region38: #{tpu_custom_call.1} parent=1 // pred_check
      _
    $region39: #{tpu_custom_call.1} parent=1 // pred_check_branch
      %35 = sbr.rel (0) target = $region41
    $region40: #{tpu_custom_call.1} parent=1 // pred_region
      _
    $region41: #{tpu_custom_call.1} parent=1 // pred_fallthru
      _
    %v36 = vld [vmem:[%s0] sm:$0xff]
    %v37 = vld [vmem:[%s0 + $0x8] sm:$0xff]
    %v38 = vld [vmem:[%s0 + $0x10] sm:$0xff]
    %v39 = vld [vmem:[%s0 + $0x18] sm:$0xff]
    %v40 = vld [vmem:[%s1] sm:$0xff]
    %v41 = vld [vmem:[%s1 + $0x8] sm:$0xff]
    %v42 = vld [vmem:[%s1 + $0x10] sm:$0xff]
    %v43 = vld [vmem:[%s1 + $0x18] sm:$0xff]
    %v44 = vld [vmem:[%s1 + $0x20] sm:$0xff]
    %v45 = vld [vmem:[%s1 + $0x28] sm:$0xff]
    %v46 = vld [vmem:[%s1 + $0x30] sm:$0xff]
    %v47 = vld [vmem:[%s1 + $0x38] sm:$0xff]
    %v48 = vld [vmem:[%s1 + $0x40] sm:$0xff]
    %v49 = vld [vmem:[%s1 + $0x48] sm:$0xff]
    %v50 = vld [vmem:[%s1 + $0x50] sm:$0xff]
    %v51 = vld [vmem:[%s1 + $0x58] sm:$0xff]
    %v52 = vld [vmem:[%s1 + $0x60] sm:$0xff]
    %v53 = vld [vmem:[%s1 + $0x68] sm:$0xff]
    %v54 = vld [vmem:[%s1 + $0x70] sm:$0xff]
    %v55 = vld [vmem:[%s1 + $0x78] sm:$0xff]
    %v56 = vld [vmem:[%s1 + $0x80] sm:$0xff]
    %v57 = vld [vmem:[%s1 + $0x88] sm:$0xff]
    %v58 = vld [vmem:[%s1 + $0x90] sm:$0xff]
    %v59 = vld [vmem:[%s1 + $0x98] sm:$0xff]
    %v60 = vld [vmem:[%s1 + $0xa0] sm:$0xff]
    %v61 = vld [vmem:[%s1 + $0xa8] sm:$0xff]
    %v62 = vld [vmem:[%s1 + $0xb0] sm:$0xff]
    %v63 = vld [vmem:[%s1 + $0xb8] sm:$0xff]
    %v64 = vld [vmem:[%s1 + $0xc0] sm:$0x1]
    %v65 = vld [vmem:[%s2] sm:$0x1]
    %v67 = vlaneseq
    %v68 = vshrl.u32 %v67, 7
    %v69 = vsub.s32 0, %v68
    %v70 = vrot.slane %v65, %v69
    %vm72 = vcmask 531456
    %v74 = vsel %vm72, %v37, 0
    %v77 = vsel %vm72, %v39, 0
    %vm79 = vcmask 1040384
    %v81 = vsel %vm79, %v64, 0
    %83 = vmatprep.subr.mxu0 0.0
    %84 = vmatpush1.msra.mxu0 %v40
    %85 = vmatprep.subr.mxu0 0.0
    %86 = vmatpush1.msra.mxu0 %v41
    %87 = vmatprep.subr.mxu0 0.0
    %88 = vmatpush1.msra.mxu0 %v42
    %89 = vmatprep.subr.mxu0 0.0
    %90 = vmatpush1.msra.mxu0 %v43
    %91 = vmatprep.subr.mxu0 0.0
    %92 = vmatpush1.msra.mxu0 %v44
    %93 = vmatprep.subr.mxu0 0.0
    %94 = vmatpush1.msra.mxu0 %v45
    %95 = vmatprep.subr.mxu0 0.0
    %96 = vmatpush1.msra.mxu0 %v46
    %97 = vmatprep.subr.mxu0 0.0
    %98 = vmatpush1.msra.mxu0 %v47
    %99 = vmatprep.subr.mxu0 0.0
    %100 = vmatpush1.msra.mxu0 %v48
    %101 = vmatprep.subr.mxu0 0.0
    %102 = vmatpush1.msra.mxu0 %v49
    %103 = vmatprep.subr.mxu0 0.0
    %104 = vmatpush1.msra.mxu0 %v50
    %105 = vmatprep.subr.mxu0 0.0
    %106 = vmatpush1.msra.mxu0 %v51
    %107 = vmatprep.subr.mxu0 0.0
    %108 = vmatpush1.msra.mxu0 %v52
    %109 = vmatprep.subr.mxu0 0.0
    %110 = vmatpush1.msra.mxu0 %v53
    %111 = vmatprep.subr.mxu0 0.0
    %112 = vmatpush1.msra.mxu0 %v54
    %113 = vmatprep.subr.mxu0 0.0
    %114 = vmatpush1.msra.mxu0 %v55
    %115 = vmatprep.subr.mxu0 0.0
    %116 = vmatpush1.msra.mxu0 %v56
    %117 = vmatprep.subr.mxu0 0.0
    %118 = vmatpush1.msra.mxu0 %v57
    %119 = vmatprep.subr.mxu0 0.0
    %120 = vmatpush1.msra.mxu0 %v58
    %121 = vmatprep.subr.mxu0 0.0
    %122 = vmatpush1.msra.mxu0 %v59
    %123 = vmatprep.subr.mxu0 0.0
    %124 = vmatpush1.msra.mxu0 %v60
    %125 = vmatprep.subr.mxu0 0.0
    %126 = vmatpush1.msra.mxu0 %v61
    %127 = vmatprep.subr.mxu0 0.0
    %128 = vmatpush1.msra.mxu0 %v62
    %129 = vmatprep.subr.mxu0 0.0
    %130 = vmatpush1.msra.mxu0 %v63
    %131 = vmatprep.subr.mxu0 0.0
    %132 = vmatpush1.msra.mxu0 %v81
    %133 = vmatprep.subr.mxu0 0.0
    %134 = vmatpush1.msra.mxu0 0.0
    %135 = vmatprep.subr.mxu0 0.0
    %136 = vmatpush1.msra.mxu0 0.0
    %137 = vmatprep.subr.mxu0 0.0
    %138 = vmatpush1.msra.mxu0 0.0
    %139 = vmatprep.subr.mxu0 0.0
    %140 = vmatpush1.msra.mxu0 0.0
    %141 = vmatprep.subr.mxu0 0.0
    %142 = vmatpush1.msra.mxu0 0.0
    %143 = vmatprep.subr.mxu0 0.0
    %144 = vmatpush1.msra.mxu0 0.0
    %145 = vmatprep.subr.mxu0 0.0
    %146 = vmatpush1.msra.mxu0 0.0
    %147 = vmatprep.mubr.f32.mxu0 %v74
    %148 = vmatmul.mubr.f32.gmra.mrb[0].mxu0 %v36
    %v149 = vpop.f32.mrb[0].mxu0
    %v150 = vadd.f32 %v70, %v149
    %v151 = vpop.f32.mrb[0].mxu0
    %152 = vmatprep.mubr.f32.mxu0 %v77
    %153 = vmatmul.mubr.f32.gmra.mrb[0].mxu0 %v38
    %v154 = vpop.f32.mrb[0].mxu0
    %v155 = vadd.f32 %v70, %v154
    %v156 = vpop.f32.mrb[0].mxu0
    %157 = vdwg.mxu0
    %v158 = vmax.f32 %v150, 0.0
    %v159 = vmax.f32 %v155, 0.0
    %v160 = vld [vmem:[%s3] sm:$0xff]
    %v161 = vld [vmem:[%s3 + $0x8] sm:$0xff]
    %v162 = vld [vmem:[%s3 + $0x10] sm:$0xff]
    %v163 = vld [vmem:[%s3 + $0x18] sm:$0xff]
    %v164 = vld [vmem:[%s4] sm:$0x1]
    %v166 = vlaneseq
    %v167 = vshrl.u32 %v166, 7
    %v168 = vsub.s32 0, %v167
    %v169 = vrot.slane %v164, %v168
    %vm171 = vcmask 261120
    %v173 = vsel %vm171, %v158, 0
    %v176 = vsel %vm171, %v159, 0
    %178 = vmatprep.subr.mxu0 0.0
    %179 = vmatpush1.msra.mxu0 %v160
    %180 = vmatprep.subr.mxu0 0.0
    %181 = vmatpush1.msra.mxu0 %v161
    %182 = vmatprep.subr.mxu0 0.0
    %183 = vmatpush1.msra.mxu0 %v162
    %184 = vmatprep.subr.mxu0 0.0
    %185 = vmatpush1.msra.mxu0 %v163
    %186 = vmatprep.subr.mxu0 0.0
    %187 = vmatpush1.msra.mxu0 0.0
    %188 = vmatprep.subr.mxu0 0.0
    %189 = vmatpush1.msra.mxu0 0.0
    %190 = vmatprep.subr.mxu0 0.0
    %191 = vmatpush1.msra.mxu0 0.0
    %192 = vmatprep.subr.mxu0 0.0
    %193 = vmatpush1.msra.mxu0 0.0
    %194 = vmatprep.subr.mxu0 0.0
    %195 = vmatpush1.msra.mxu0 0.0
    %196 = vmatprep.subr.mxu0 0.0
    %197 = vmatpush1.msra.mxu0 0.0
    %198 = vmatprep.subr.mxu0 0.0
    %199 = vmatpush1.msra.mxu0 0.0
    %200 = vmatprep.subr.mxu0 0.0
    %201 = vmatpush1.msra.mxu0 0.0
    %202 = vmatprep.subr.mxu0 0.0
    %203 = vmatpush1.msra.mxu0 0.0
    %204 = vmatprep.subr.mxu0 0.0
    %205 = vmatpush1.msra.mxu0 0.0
    %206 = vmatprep.subr.mxu0 0.0
    %207 = vmatpush1.msra.mxu0 0.0
    %208 = vmatprep.subr.mxu0 0.0
    %209 = vmatpush1.msra.mxu0 0.0
    %210 = vmatprep.subr.mxu0 0.0
    %211 = vmatpush1.msra.mxu0 0.0
    %212 = vmatprep.subr.mxu0 0.0
    %213 = vmatpush1.msra.mxu0 0.0
    %214 = vmatprep.subr.mxu0 0.0
    %215 = vmatpush1.msra.mxu0 0.0
    %216 = vmatprep.subr.mxu0 0.0
    %217 = vmatpush1.msra.mxu0 0.0
    %218 = vmatprep.subr.mxu0 0.0
    %219 = vmatpush1.msra.mxu0 0.0
    %220 = vmatprep.subr.mxu0 0.0
    %221 = vmatpush1.msra.mxu0 0.0
    %222 = vmatprep.subr.mxu0 0.0
    %223 = vmatpush1.msra.mxu0 0.0
    %224 = vmatprep.subr.mxu0 0.0
    %225 = vmatpush1.msra.mxu0 0.0
    %226 = vmatprep.subr.mxu0 0.0
    %227 = vmatpush1.msra.mxu0 0.0
    %228 = vmatprep.subr.mxu0 0.0
    %229 = vmatpush1.msra.mxu0 0.0
    %230 = vmatprep.subr.mxu0 0.0
    %231 = vmatpush1.msra.mxu0 0.0
    %232 = vmatprep.subr.mxu0 0.0
    %233 = vmatpush1.msra.mxu0 0.0
    %234 = vmatprep.subr.mxu0 0.0
    %235 = vmatpush1.msra.mxu0 0.0
    %236 = vmatprep.subr.mxu0 0.0
    %237 = vmatpush1.msra.mxu0 0.0
    %238 = vmatprep.subr.mxu0 0.0
    %239 = vmatpush1.msra.mxu0 0.0
    %240 = vmatprep.subr.mxu0 0.0
    %241 = vmatpush1.msra.mxu0 0.0
    %242 = vmatprep.mubr.f32.mxu0 0.0
    %243 = vmatmul.mubr.f32.gmra.mrb[0].mxu0 %v173
    %v244 = vpop.f32.mrb[0].mxu0
    %v245 = vadd.f32 %v169, %v244
    %v246 = vpop.f32.mrb[0].mxu0
    %247 = vmatprep.mubr.f32.mxu0 0.0
    %248 = vmatmul.mubr.f32.gmra.mrb[0].mxu0 %v176
    %v249 = vpop.f32.mrb[0].mxu0
    %v250 = vadd.f32 %v169, %v249
    %v251 = vpop.f32.mrb[0].mxu0
    %252 = vdwg.mxu0
    %v253 = vtanh.pop %v245
    %v254 = vtanh.pop %v250
    %v255 = vld [vmem:[%s5] sm:$0xff]
    %v256 = vld [vmem:[%s5 + $0x8] sm:$0xff]
    %v257 = vld [vmem:[%s5 + $0x10] sm:$0xff]
    %v258 = vld [vmem:[%s5 + $0x18] sm:$0xff]
    %v259 = vld [vmem:[%s5 + $0x20] sm:$0xff]
    %v260 = vld [vmem:[%s5 + $0x28] sm:$0xff]
    %v261 = vld [vmem:[%s5 + $0x30] sm:$0xff]
    %v262 = vld [vmem:[%s5 + $0x38] sm:$0xff]
    %v263 = vld [vmem:[%s5 + $0x40] sm:$0xff]
    %v264 = vld [vmem:[%s5 + $0x48] sm:$0xff]
    %v265 = vld [vmem:[%s5 + $0x50] sm:$0xff]
    %v266 = vld [vmem:[%s5 + $0x58] sm:$0xff]
    %v267 = vld [vmem:[%s5 + $0x60] sm:$0xff]
    %v268 = vld [vmem:[%s5 + $0x68] sm:$0xff]
    %v269 = vld [vmem:[%s5 + $0x70] sm:$0xff]
    %v270 = vld [vmem:[%s5 + $0x78] sm:$0xff]
    %v271 = vld [vmem:[%s5 + $0x80] sm:$0xff]
    %v272 = vld [vmem:[%s5 + $0x88] sm:$0xff]
    %v273 = vld [vmem:[%s5 + $0x90] sm:$0xff]
    %v274 = vld [vmem:[%s5 + $0x98] sm:$0xff]
    %v275 = vld [vmem:[%s5 + $0xa0] sm:$0xff]
    %v276 = vld [vmem:[%s5 + $0xa8] sm:$0xff]
    %v277 = vld [vmem:[%s5 + $0xb0] sm:$0xff]
    %v278 = vld [vmem:[%s5 + $0xb8] sm:$0xff]
    %v279 = vld [vmem:[%s5 + $0xc0] sm:$0x1]
    %v280 = vld [vmem:[%s6] sm:$0xff]
    %vm281 = vcmask 64512
    %v283 = vsel %vm281, %v253, 0
    %v286 = vsel %vm281, %v254, 0
    %288 = vmatprep.subr.mxu0 0.0
    %289 = vmatpush1.msra.mxu0 %v280
    %290 = vmatprep.subr.mxu0 0.0
    %291 = vmatpush1.msra.mxu0 0.0
    %292 = vmatprep.subr.mxu0 0.0
    %293 = vmatpush1.msra.mxu0 0.0
    %294 = vmatprep.subr.mxu0 0.0
    %295 = vmatpush1.msra.mxu0 0.0
    %296 = vmatprep.subr.mxu0 0.0
    %297 = vmatpush1.msra.mxu0 0.0
    %298 = vmatprep.subr.mxu0 0.0
    %299 = vmatpush1.msra.mxu0 0.0
    %300 = vmatprep.subr.mxu0 0.0
    %301 = vmatpush1.msra.mxu0 0.0
    %302 = vmatprep.subr.mxu0 0.0
    %303 = vmatpush1.msra.mxu0 0.0
    %304 = vmatprep.subr.mxu0 0.0
    %305 = vmatpush1.msra.mxu0 0.0
    %306 = vmatprep.subr.mxu0 0.0
    %307 = vmatpush1.msra.mxu0 0.0
    %308 = vmatprep.subr.mxu0 0.0
    %309 = vmatpush1.msra.mxu0 0.0
    %310 = vmatprep.subr.mxu0 0.0
    %311 = vmatpush1.msra.mxu0 0.0
    %312 = vmatprep.subr.mxu0 0.0
    %313 = vmatpush1.msra.mxu0 0.0
    %314 = vmatprep.subr.mxu0 0.0
    %315 = vmatpush1.msra.mxu0 0.0
    %316 = vmatprep.subr.mxu0 0.0
    %317 = vmatpush1.msra.mxu0 0.0
    %318 = vmatprep.subr.mxu0 0.0
    %319 = vmatpush1.msra.mxu0 0.0
    %320 = vmatprep.subr.mxu0 0.0
    %321 = vmatpush1.msra.mxu0 0.0
    %322 = vmatprep.subr.mxu0 0.0
    %323 = vmatpush1.msra.mxu0 0.0
    %324 = vmatprep.subr.mxu0 0.0
    %325 = vmatpush1.msra.mxu0 0.0
    %326 = vmatprep.subr.mxu0 0.0
    %327 = vmatpush1.msra.mxu0 0.0
    %328 = vmatprep.subr.mxu0 0.0
    %329 = vmatpush1.msra.mxu0 0.0
    %330 = vmatprep.subr.mxu0 0.0
    %331 = vmatpush1.msra.mxu0 0.0
    %332 = vmatprep.subr.mxu0 0.0
    %333 = vmatpush1.msra.mxu0 0.0
    %334 = vmatprep.subr.mxu0 0.0
    %335 = vmatpush1.msra.mxu0 0.0
    %336 = vmatprep.subr.mxu0 0.0
    %337 = vmatpush1.msra.mxu0 0.0
    %338 = vmatprep.subr.mxu0 0.0
    %339 = vmatpush1.msra.mxu0 0.0
    %340 = vmatprep.subr.mxu0 0.0
    %341 = vmatpush1.msra.mxu0 0.0
    %342 = vmatprep.subr.mxu0 0.0
    %343 = vmatpush1.msra.mxu0 0.0
    %344 = vmatprep.subr.mxu0 0.0
    %345 = vmatpush1.msra.mxu0 0.0
    %346 = vmatprep.subr.mxu0 0.0
    %347 = vmatpush1.msra.mxu0 0.0
    %348 = vmatprep.subr.mxu0 0.0
    %349 = vmatpush1.msra.mxu0 0.0
    %350 = vmatprep.subr.mxu0 0.0
    %351 = vmatpush1.msra.mxu0 0.0
    %352 = vmatprep.mubr.f32.mxu0 0.0
    %353 = vmatmul.mubr.f32.gmra.mrb[0].mxu0 %v283
    %v354 = vpop.f32.mrb[0].mxu0
    %v355 = vadd.f32 0.0, %v354
    %v356 = vpop.f32.mrb[0].mxu0
    %357 = vmatprep.mubr.f32.mxu0 0.0
    %358 = vmatmul.mubr.f32.gmra.mrb[0].mxu0 %v286
    %v359 = vpop.f32.mrb[0].mxu0
    %v360 = vadd.f32 0.0, %v359
    %v361 = vpop.f32.mrb[0].mxu0
    %362 = vdwg.mxu0
    %v364 = vsel %vm79, %v279, 0
    %366 = vmatprep.subr.mxu0 0.0
    %367 = vmatpush1.msra.mxu0 %v255
    %368 = vmatprep.subr.mxu0 0.0
    %369 = vmatpush1.msra.mxu0 %v256
    %370 = vmatprep.subr.mxu0 0.0
    %371 = vmatpush1.msra.mxu0 %v257
    %372 = vmatprep.subr.mxu0 0.0
    %373 = vmatpush1.msra.mxu0 %v258
    %374 = vmatprep.subr.mxu0 0.0
    %375 = vmatpush1.msra.mxu0 %v259
    %376 = vmatprep.subr.mxu0 0.0
    %377 = vmatpush1.msra.mxu0 %v260
    %378 = vmatprep.subr.mxu0 0.0
    %379 = vmatpush1.msra.mxu0 %v261
    %380 = vmatprep.subr.mxu0 0.0
    %381 = vmatpush1.msra.mxu0 %v262
    %382 = vmatprep.subr.mxu0 0.0
    %383 = vmatpush1.msra.mxu0 %v263
    %384 = vmatprep.subr.mxu0 0.0
    %385 = vmatpush1.msra.mxu0 %v264
    %386 = vmatprep.subr.mxu0 0.0
    %387 = vmatpush1.msra.mxu0 %v265
    %388 = vmatprep.subr.mxu0 0.0
    %389 = vmatpush1.msra.mxu0 %v266
    %390 = vmatprep.subr.mxu0 0.0
    %391 = vmatpush1.msra.mxu0 %v267
    %392 = vmatprep.subr.mxu0 0.0
    %393 = vmatpush1.msra.mxu0 %v268
    %394 = vmatprep.subr.mxu0 0.0
    %395 = vmatpush1.msra.mxu0 %v269
    %396 = vmatprep.subr.mxu0 0.0
    %397 = vmatpush1.msra.mxu0 %v270
    %398 = vmatprep.subr.mxu0 0.0
    %399 = vmatpush1.msra.mxu0 %v271
    %400 = vmatprep.subr.mxu0 0.0
    %401 = vmatpush1.msra.mxu0 %v272
    %402 = vmatprep.subr.mxu0 0.0
    %403 = vmatpush1.msra.mxu0 %v273
    %404 = vmatprep.subr.mxu0 0.0
    %405 = vmatpush1.msra.mxu0 %v274
    %406 = vmatprep.subr.mxu0 0.0
    %407 = vmatpush1.msra.mxu0 %v275
    %408 = vmatprep.subr.mxu0 0.0
    %409 = vmatpush1.msra.mxu0 %v276
    %410 = vmatprep.subr.mxu0 0.0
    %411 = vmatpush1.msra.mxu0 %v277
    %412 = vmatprep.subr.mxu0 0.0
    %413 = vmatpush1.msra.mxu0 %v278
    %414 = vmatprep.subr.mxu0 0.0
    %415 = vmatpush1.msra.mxu0 %v364
    %416 = vmatprep.subr.mxu0 0.0
    %417 = vmatpush1.msra.mxu0 0.0
    %418 = vmatprep.subr.mxu0 0.0
    %419 = vmatpush1.msra.mxu0 0.0
    %420 = vmatprep.subr.mxu0 0.0
    %421 = vmatpush1.msra.mxu0 0.0
    %422 = vmatprep.subr.mxu0 0.0
    %423 = vmatpush1.msra.mxu0 0.0
    %424 = vmatprep.subr.mxu0 0.0
    %425 = vmatpush1.msra.mxu0 0.0
    %426 = vmatprep.subr.mxu0 0.0
    %427 = vmatpush1.msra.mxu0 0.0
    %428 = vmatprep.subr.mxu0 0.0
    %429 = vmatpush1.msra.mxu0 0.0
    %430 = vmatprep.mubr.f32.mxu0 %v74
    %431 = vmatmul.mubr.f32.gmra.mrb[0].mxu0 %v36
    %v432 = vpop.f32.mrb[0].mxu0
    %v433 = vadd.f32 %v355, %v432
    %v434 = vpop.f32.mrb[0].mxu0
    %435 = vmatprep.mubr.f32.mxu0 %v77
    %436 = vmatmul.mubr.f32.gmra.mrb[0].mxu0 %v38
    %v437 = vpop.f32.mrb[0].mxu0
    %v438 = vadd.f32 %v360, %v437
    %v439 = vpop.f32.mrb[0].mxu0
    %440 = vdwg.mxu0
    %v441 = vld [vmem:[%s7] sm:$0x1]
    %v443 = vlaneseq
    %v444 = vshrl.u32 %v443, 7
    %v445 = vsub.s32 0, %v444
    %v446 = vrot.slane %v441, %v445
    %v448 = vadd.f32 %v433, %v446
    %v449 = vadd.f32 %v438, %v446
    %v450 = vmax.f32 %v448, 0.0
    %v451 = vmax.f32 %v449, 0.0
    %v452 = vld [vmem:[%s8] sm:$0xff]
    %v453 = vld [vmem:[%s8 + $0x8] sm:$0xff]
    %v454 = vld [vmem:[%s8 + $0x10] sm:$0xff]
    %v455 = vld [vmem:[%s8 + $0x18] sm:$0xff]
    %v456 = vld [vmem:[%s9] sm:$0x1]
    %v458 = vlaneseq
    %v459 = vshrl.u32 %v458, 7
    %v460 = vsub.s32 0, %v459
    %v461 = vrot.slane %v456, %v460
    %v464 = vsel %vm171, %v450, 0
    %v467 = vsel %vm171, %v451, 0
    %469 = vmatprep.subr.mxu0 0.0
    %470 = vmatpush1.msra.mxu0 %v452
    %471 = vmatprep.subr.mxu0 0.0
    %472 = vmatpush1.msra.mxu0 %v453
    %473 = vmatprep.subr.mxu0 0.0
    %474 = vmatpush1.msra.mxu0 %v454
    %475 = vmatprep.subr.mxu0 0.0
    %476 = vmatpush1.msra.mxu0 %v455
    %477 = vmatprep.subr.mxu0 0.0
    %478 = vmatpush1.msra.mxu0 0.0
    %479 = vmatprep.subr.mxu0 0.0
    %480 = vmatpush1.msra.mxu0 0.0
    %481 = vmatprep.subr.mxu0 0.0
    %482 = vmatpush1.msra.mxu0 0.0
    %483 = vmatprep.subr.mxu0 0.0
    %484 = vmatpush1.msra.mxu0 0.0
    %485 = vmatprep.subr.mxu0 0.0
    %486 = vmatpush1.msra.mxu0 0.0
    %487 = vmatprep.subr.mxu0 0.0
    %488 = vmatpush1.msra.mxu0 0.0
    %489 = vmatprep.subr.mxu0 0.0
    %490 = vmatpush1.msra.mxu0 0.0
    %491 = vmatprep.subr.mxu0 0.0
    %492 = vmatpush1.msra.mxu0 0.0
    %493 = vmatprep.subr.mxu0 0.0
    %494 = vmatpush1.msra.mxu0 0.0
    %495 = vmatprep.subr.mxu0 0.0
    %496 = vmatpush1.msra.mxu0 0.0
    %497 = vmatprep.subr.mxu0 0.0
    %498 = vmatpush1.msra.mxu0 0.0
    %499 = vmatprep.subr.mxu0 0.0
    %500 = vmatpush1.msra.mxu0 0.0
    %501 = vmatprep.subr.mxu0 0.0
    %502 = vmatpush1.msra.mxu0 0.0
    %503 = vmatprep.subr.mxu0 0.0
    %504 = vmatpush1.msra.mxu0 0.0
    %505 = vmatprep.subr.mxu0 0.0
    %506 = vmatpush1.msra.mxu0 0.0
    %507 = vmatprep.subr.mxu0 0.0
    %508 = vmatpush1.msra.mxu0 0.0
    %509 = vmatprep.subr.mxu0 0.0
    %510 = vmatpush1.msra.mxu0 0.0
    %511 = vmatprep.subr.mxu0 0.0
    %512 = vmatpush1.msra.mxu0 0.0
    %513 = vmatprep.subr.mxu0 0.0
    %514 = vmatpush1.msra.mxu0 0.0
    %515 = vmatprep.subr.mxu0 0.0
    %516 = vmatpush1.msra.mxu0 0.0
    %517 = vmatprep.subr.mxu0 0.0
    %518 = vmatpush1.msra.mxu0 0.0
    %519 = vmatprep.subr.mxu0 0.0
    %520 = vmatpush1.msra.mxu0 0.0
    %521 = vmatprep.subr.mxu0 0.0
    %522 = vmatpush1.msra.mxu0 0.0
    %523 = vmatprep.subr.mxu0 0.0
    %524 = vmatpush1.msra.mxu0 0.0
    %525 = vmatprep.subr.mxu0 0.0
    %526 = vmatpush1.msra.mxu0 0.0
    %527 = vmatprep.subr.mxu0 0.0
    %528 = vmatpush1.msra.mxu0 0.0
    %529 = vmatprep.subr.mxu0 0.0
    %530 = vmatpush1.msra.mxu0 0.0
    %531 = vmatprep.subr.mxu0 0.0
    %532 = vmatpush1.msra.mxu0 0.0
    %533 = vmatprep.mubr.f32.mxu0 0.0
    %534 = vmatmul.mubr.f32.gmra.mrb[0].mxu0 %v464
    %v535 = vpop.f32.mrb[0].mxu0
    %v536 = vadd.f32 %v461, %v535
    %v537 = vpop.f32.mrb[0].mxu0
    %538 = vmatprep.mubr.f32.mxu0 0.0
    %539 = vmatmul.mubr.f32.gmra.mrb[0].mxu0 %v467
    %v540 = vpop.f32.mrb[0].mxu0
    %v541 = vadd.f32 %v461, %v540
    %v542 = vpop.f32.mrb[0].mxu0
    %543 = vdwg.mxu0
    %vm544 = vcmask 408576
    %545 = vst.msk [vmem:[#allocation2] sm:$0xff] %vm544, %v536
    %546 = vst.msk [vmem:[#allocation2 + $0x8] sm:$0xff] %vm544, %v541
    // Predicated region
    $region42: #{tpu_custom_call.1} parent=1 // pred_check
      _
    $region43: #{tpu_custom_call.1} parent=1 // pred_check_branch
      %548 = sbr.rel (0) target = $region45
    $region44: #{tpu_custom_call.1} parent=1 // pred_region
      %s550 = ssub.s32 256, 256
      %551 = vsyncadd [#allocation3], %s550
      %s552 = sshll.u32 [#allocation2], 4
      %s553 = int_to_ptr.vmem [resolvable:$true] %s552
      %558 = dma.vmem_to_hbm [thread:$0]  %s553, 256, %s10, [#allocation3], 128, 128, 8
    $region45: #{tpu_custom_call.1} parent=1 // pred_fallthru
      _
    // Predicated region
    $region46: #{tpu_custom_call.1} parent=1 // pred_check
      _
    $region47: #{tpu_custom_call.1} parent=1 // pred_check_branch
      %560 = sbr.rel (0) target = $region49
    $region48: #{tpu_custom_call.1} parent=1 // pred_region
      %561 = dma.done [#allocation3], 256
    $region49: #{tpu_custom_call.1} parent=1 // pred_fallthru
      _
    %562 = vsyncpa [#allocation3], 1

</llo_original>
